<compile_context>
chip_gen: v7x
topology: tpu7x:2x2x1
jax: 0.10.0
libtpu: 0.0.40
codegen_flags: <defaults>
</compile_context>

<pallas_src>
import jax
import jax.numpy as jnp
from jax.experimental import pallas as pl
from jax.experimental.pallas import tpu as pltpu


def _round_up(x, m):
    return ((x + m - 1) // m) * m


# ---------------------------------------------------------------------------
# Kernel bodies.  Tiles are either 2-D (C, t_hw) (batch squeezed, spatially
# tiled mode) or 3-D (Bt, C, HW) (batch-fused mode); both bodies handle either.
# ---------------------------------------------------------------------------
def _skip_kernel_vpu(w_ref, x_ref, skip_ref, out_ref):
    # Tiny-C path: C broadcast multiply-accumulates on the VPU (no tiny-K MXU
    # matmul).  w_ref: (C_out, C_in); x/skip/out: (..., C, spatial).
    x = x_ref[...].astype(jnp.float32)
    w = w_ref[...].astype(jnp.float32)
    acc = skip_ref[...].astype(jnp.float32)
    c_in = x.shape[-2]
    for ci in range(c_in):                        # static unroll, C is tiny
        acc = acc + w[:, ci:ci + 1] * x[..., ci:ci + 1, :]
    out_ref[...] = acc.astype(out_ref.dtype)


def _skip_kernel_mxu(w_ref, x_ref, skip_ref, out_ref):
    # General path: (C_out, C_in) channel matmul on the MXU, f32 accumulate.
    w = w_ref[...]
    x = x_ref[...]
    if x.ndim == 2:
        y = jnp.dot(w, x, preferred_element_type=jnp.float32)
    else:
        y = jnp.einsum("oc,bcs->bos", w, x,
                       preferred_element_type=jnp.float32)
    out_ref[...] = (y + skip_ref[...].astype(jnp.float32)).astype(out_ref.dtype)


def _chip_params():
    """Generation-aware knobs: (vpu_max_c, tile_bytes_target, vmem_capacity)."""
    kind = ""
    try:
        kind = (jax.devices()[0].device_kind or "").lower()
    except Exception:
        pass
    if "v7" in kind:
        # 3.2 TB/s HBM per TC: VPU path flips to compute-bound at C~8; 64 MiB VMEM.
        vpu_max_c, tile_target, default_cap = 8, 5 << 20, 64 << 20
    elif "v5" in kind:
        # Slower HBM; each step already long, 2 MiB tiles are enough.
        vpu_max_c, tile_target, default_cap = 24, 2 << 20, 128 << 20
    else:
        # v6e or unknown -> v6e-like defaults.
        vpu_max_c, tile_target, default_cap = 16, 6 << 20, 128 << 20
    vmem_cap = default_cap
    try:
        vmem_cap = int(pltpu.get_tpu_info().vmem_capacity_bytes)
    except Exception:
        pass
    return vpu_max_c, tile_target, vmem_cap


def skip_forward(x_nchw, skip_nchw, weight):
    """Equivalent of Skip.forward.

    Args:
      x_nchw:    (B, C, H, W)
      skip_nchw: (B, C, H, W)
      weight:    (C_out, C_in) — the 1x1 conv weight squeezed from (C, C, 1, 1)

    Returns:
      (x_nchw, conv1x1(x_nchw) + skip_nchw), both in NCHW.
    """
    B, C, H, W = x_nchw.shape
    HW = H * W
    itemsize = jnp.dtype(x_nchw.dtype).itemsize

    vpu_max_c, tile_target, vmem_cap = _chip_params()

    # Keep the pipeline footprint (2 buffers x 3 tensors x tile + weight +
    # slack) comfortably inside physical VMEM on every generation.
    vmem_budget = (vmem_cap * 3) // 4
    w_bytes = 2 * C * C * itemsize
    slack = 2 << 20
    tile_target = max(512 << 10,
                      min(tile_target, (vmem_budget - w_bytes - slack) // 6))

    # Free reshapes (H, W contiguous in NCHW): no extra HBM traffic.
    x3 = x_nchw.reshape(B, C, HW)
    s3 = skip_nchw.reshape(B, C, HW)

    # Balanced, 128-aligned spatial (lane) tiling toward tile_target bytes.
    row_bytes = C * itemsize
    max_cols = max(128, (tile_target // row_bytes) // 128 * 128)
    if HW <= max_cols:
        t_hw, n_col = HW, 1
    else:
        n_col = -(-HW // max_cols)
        t_hw = _round_up(-(-HW // n_col), 128)
        n_col = -(-HW // t_hw)

    kernel = _skip_kernel_vpu if C <= vpu_max_c else _skip_kernel_mxu

    if n_col == 1:
        # Whole spatial extent fits in one tile: fuse several batch elements
        # per grid step so the fixed ~0.35 us/step overhead is amortized and
        # each DMA is a meaningful slab.  Bt divides B exactly (no ragged tail).
        slab = C * HW * itemsize
        max_bt = max(1, tile_target // max(1, slab))
        bt = 1
        for d in range(1, B + 1):
            if B % d == 0 and d <= max_bt:
                bt = d
        grid = (B // bt,)
        data_spec = pl.BlockSpec((bt, C, HW), lambda i: (i, 0, 0))
        tile_bytes = bt * C * HW * itemsize
    else:
        # Spatially tiled, batch squeezed.  Flattened 1-D grid keeps the
        # parallel axis long so v7x can shard steps across both TensorCores.
        grid = (B * n_col,)
        data_spec = pl.BlockSpec((None, C, t_hw),
                                 lambda i: (i // n_col, 0, i % n_col))
        tile_bytes = C * t_hw * itemsize

    vmem_limit = int(min(max(6 * tile_bytes + w_bytes + slack, 16 << 20),
                         vmem_budget))

    cost = pl.CostEstimate(
        flops=2 * B * C * C * HW,
        transcendentals=0,
        bytes_accessed=3 * B * C * HW * itemsize + C * C * itemsize,
    )

    out3 = pl.pallas_call(
        kernel,
        out_shape=jax.ShapeDtypeStruct((B, C, HW), x_nchw.dtype),
        grid_spec=pltpu.PrefetchScalarGridSpec(
            num_scalar_prefetch=0,
            grid=grid,
            in_specs=[
                pl.BlockSpec((C, C), lambda i: (0, 0)),  # weight (resident)
                data_spec,                               # x tile
                data_spec,                               # skip tile
            ],
            out_specs=data_spec,
        ),
        compiler_params=pltpu.CompilerParams(
            dimension_semantics=("parallel",),
            vmem_limit_bytes=vmem_limit,
        ),
        cost_estimate=cost,
    )(weight, x3, s3)

    # NOTE: input_output_aliases={2: 0} would save the output allocation but
    # is only safe if the caller never reuses `skip`; left off for safety.
    return x_nchw, out3.reshape(B, C, H, W)


if __name__ == "__main__":
    key = jax.random.PRNGKey(0)
    k_x, k_s, k_w = jax.random.split(key, 3)

    B, C, H, W = 2, 4, 16, 16
    x = jax.random.normal(k_x, (B, C, H, W), dtype=jnp.float32)
    skip = jax.random.normal(k_s, (B, C, H, W), dtype=jnp.float32)

    # Deterministic init of the 1x1 conv weight (PyTorch shape (C, C, 1, 1),
    # squeezed to (C, C) here). Kaiming-uniform-like bound.
    bound = 1.0 / jnp.sqrt(jnp.float32(C))
    weight = jax.random.uniform(k_w, (C, C), minval=-bound, maxval=bound,
                                dtype=jnp.float32)

    x_out, y_out = skip_forward(x, skip, weight)
    jax.block_until_ready((x_out, y_out))

    # Reference check (pure JAX): 1x1 conv == einsum over channels.
    y_ref = jnp.einsum("oc,bchw->bohw", weight, x) + skip
    assert jnp.allclose(x_out, x), "passthrough mismatch"
    assert jnp.allclose(y_out, y_ref, atol=1e-5, rtol=1e-5), "conv+skip mismatch"

    print("KERNEL_OK")
</pallas_src>

<mosaic_0001>
module attributes {stable_mosaic.version = 11 : i64} {
  func.func @_skip_kernel_vpu(%arg0: i32, %arg1: memref<4x4xf32, #tpu.memory_space<vmem>>, %arg2: memref<2x4x256xf32, #tpu.memory_space<vmem>>, %arg3: memref<2x4x256xf32, #tpu.memory_space<vmem>>, %arg4: memref<2x4x256xf32, #tpu.memory_space<vmem>>) attributes {dimension_semantics = [#tpu.dimension_semantics<parallel>], iteration_bounds = array<i64: 1>, scalar_prefetch = 0 : i64, scratch_operands = 0 : i64, tpu.core_type = #tpu.core_type<tc>, window_params = [{pipeline_mode = #tpu.pipeline_mode<synchronous>, transform_indices = @transform_0, window_bounds = array<i64: 4, 4>}, {transform_indices = @transform_1, window_bounds = array<i64: 2, 4, 256>}, {transform_indices = @transform_2, window_bounds = array<i64: 2, 4, 256>}, {transform_indices = @transform_3, window_bounds = array<i64: 2, 4, 256>}]} {
    %c0 = arith.constant 0 : index
    %c0_0 = arith.constant 0 : index
    %c0_1 = arith.constant 0 : index
    %0 = vector.load %arg2[%c0, %c0_0, %c0_1] : memref<2x4x256xf32, #tpu.memory_space<vmem>>, vector<2x4x256xf32>
    %c0_2 = arith.constant 0 : index
    %c0_3 = arith.constant 0 : index
    %1 = vector.load %arg1[%c0_2, %c0_3] : memref<4x4xf32, #tpu.memory_space<vmem>>, vector<4x4xf32>
    %c0_4 = arith.constant 0 : index
    %c0_5 = arith.constant 0 : index
    %c0_6 = arith.constant 0 : index
    %2 = vector.load %arg3[%c0_4, %c0_5, %c0_6] : memref<2x4x256xf32, #tpu.memory_space<vmem>>, vector<2x4x256xf32>
    %3 = vector.extract_strided_slice %1 {offsets = [0, 0], sizes = [4, 1], strides = [1, 1]} : vector<4x4xf32> to vector<4x1xf32>
    %4 = vector.extract_strided_slice %0 {offsets = [0, 0, 0], sizes = [2, 1, 256], strides = [1, 1, 1]} : vector<2x4x256xf32> to vector<2x1x256xf32>
    %5 = vector.shape_cast %3 : vector<4x1xf32> to vector<1x4x1xf32>
    %6 = vector.broadcast %5 : vector<1x4x1xf32> to vector<2x4x256xf32>
    %7 = vector.broadcast %4 : vector<2x1x256xf32> to vector<2x4x256xf32>
    %8 = arith.mulf %6, %7 : vector<2x4x256xf32>
    %9 = arith.addf %2, %8 : vector<2x4x256xf32>
    %10 = vector.extract_strided_slice %1 {offsets = [0, 1], sizes = [4, 1], strides = [1, 1]} : vector<4x4xf32> to vector<4x1xf32>
    %11 = vector.extract_strided_slice %0 {offsets = [0, 1, 0], sizes = [2, 1, 256], strides = [1, 1, 1]} : vector<2x4x256xf32> to vector<2x1x256xf32>
    %12 = vector.shape_cast %10 : vector<4x1xf32> to vector<1x4x1xf32>
    %13 = vector.broadcast %12 : vector<1x4x1xf32> to vector<2x4x256xf32>
    %14 = vector.broadcast %11 : vector<2x1x256xf32> to vector<2x4x256xf32>
    %15 = arith.mulf %13, %14 : vector<2x4x256xf32>
    %16 = arith.addf %9, %15 : vector<2x4x256xf32>
    %17 = vector.extract_strided_slice %1 {offsets = [0, 2], sizes = [4, 1], strides = [1, 1]} : vector<4x4xf32> to vector<4x1xf32>
    %18 = vector.extract_strided_slice %0 {offsets = [0, 2, 0], sizes = [2, 1, 256], strides = [1, 1, 1]} : vector<2x4x256xf32> to vector<2x1x256xf32>
    %19 = vector.shape_cast %17 : vector<4x1xf32> to vector<1x4x1xf32>
    %20 = vector.broadcast %19 : vector<1x4x1xf32> to vector<2x4x256xf32>
    %21 = vector.broadcast %18 : vector<2x1x256xf32> to vector<2x4x256xf32>
    %22 = arith.mulf %20, %21 : vector<2x4x256xf32>
    %23 = arith.addf %16, %22 : vector<2x4x256xf32>
    %24 = vector.extract_strided_slice %1 {offsets = [0, 3], sizes = [4, 1], strides = [1, 1]} : vector<4x4xf32> to vector<4x1xf32>
    %25 = vector.extract_strided_slice %0 {offsets = [0, 3, 0], sizes = [2, 1, 256], strides = [1, 1, 1]} : vector<2x4x256xf32> to vector<2x1x256xf32>
    %26 = vector.shape_cast %24 : vector<4x1xf32> to vector<1x4x1xf32>
    %27 = vector.broadcast %26 : vector<1x4x1xf32> to vector<2x4x256xf32>
    %28 = vector.broadcast %25 : vector<2x1x256xf32> to vector<2x4x256xf32>
    %29 = arith.mulf %27, %28 : vector<2x4x256xf32>
    %30 = arith.addf %23, %29 : vector<2x4x256xf32>
    %c0_7 = arith.constant 0 : index
    %c0_8 = arith.constant 0 : index
    %c0_9 = arith.constant 0 : index
    %31 = vector.load %arg4[%c0_7, %c0_8, %c0_9] : memref<2x4x256xf32, #tpu.memory_space<vmem>>, vector<2x4x256xf32>
    tpu.vector_store %arg4[%c0_7, %c0_8, %c0_9], %30 {strides = array<i32>} : memref<2x4x256xf32, #tpu.memory_space<vmem>>, vector<2x4x256xf32>,
    return
  }
  func.func @transform_0(%arg0: i32) -> (i32, i32) {
    %c0_i32 = arith.constant 0 : i32
    %c0_i32_0 = arith.constant 0 : i32
    %c0_i32_1 = arith.constant 0 : i32
    return %c0_i32, %c0_i32_0 : i32, i32
  }
  func.func @transform_1(%arg0: i32) -> (i32, i32, i32) {
    %c0_i32 = arith.constant 0 : i32
    %c0_i32_0 = arith.constant 0 : i32
    %c0_i32_1 = arith.constant 0 : i32
    return %arg0, %c0_i32, %c0_i32_0 : i32, i32, i32
  }
  func.func @transform_2(%arg0: i32) -> (i32, i32, i32) {
    %c0_i32 = arith.constant 0 : i32
    %c0_i32_0 = arith.constant 0 : i32
    %c0_i32_1 = arith.constant 0 : i32
    return %arg0, %c0_i32, %c0_i32_0 : i32, i32, i32
  }
  func.func @transform_3(%arg0: i32) -> (i32, i32, i32) {
    %c0_i32 = arith.constant 0 : i32
    %c0_i32_0 = arith.constant 0 : i32
    %c0_i32_1 = arith.constant 0 : i32
    return %arg0, %c0_i32, %c0_i32_0 : i32, i32, i32
  }
}

</mosaic_0001>

<llo_original>
// kernel: tpu_custom_call.1
$region0: #{tpu_custom_call.1}
  #allocation0 [shape = 'u32[]', space=smem, size = 0x4, offset = 0x4, fixed_abs, tag = 'smem constant byte address 0x4 - core index']
  #allocation1 [shape = 'u32[144,128]{1,0:T(1,128)}', space=vmem, size = 0x12000, scoped, tag = 'internal scratch']
  %s0 = inlined_call_operand.hbm [shape: f32[4,4], index: 0, kind: input, shape index: {}]
  %s1 = inlined_call_operand.hbm [shape: f32[2,4,256], index: 1, kind: input, shape index: {}]
  %s2 = inlined_call_operand.hbm [shape: f32[2,4,256], index: 2, kind: input, shape index: {}]
  %s3 = inlined_call_operand.hbm [shape: f32[2,4,256], index: 3, kind: output, shape index: {}]
  %s4 = sld [smem:[#allocation0]]
  $region34: #{tpu_custom_call.1} parent=0
    _
  %s6 = ssub.s32 1, %s4
  %s7 = scalar_select 0, %s6, %s4
  $region1: #{tpu_custom_call.1} parent=0
    #allocation2 [shape = 'u8[2048]{0}', space=vmem, size = 0x800, scoped, tag = 'input window, operand 0, single buffered']
    #allocation3 [shape = 's32[1]{0}', space=sflag, size = 0x4, scoped, tag = 'scoped memory for tpu_custom_call.1']
    #allocation4 [shape = 's32[1]{0}', space=sflag, size = 0x4, scoped, tag = 'scoped memory for tpu_custom_call.1']
    #allocation5 [shape = 'u8[8192]{0}', space=vmem, size = 0x2000, scoped, tag = 'input window, operand 1, single buffered']
    #allocation6 [shape = 's32[1]{0}', space=sflag, size = 0x4, scoped, tag = 'scoped memory for tpu_custom_call.1']
    #allocation7 [shape = 'u8[8192]{0}', space=vmem, size = 0x2000, scoped, tag = 'input window, operand 2, single buffered']
    #allocation8 [shape = 'u8[8192]{0}', space=vmem, size = 0x2000, scoped, tag = 'output window, operand 0, single buffered']
    %8 = vsyncpa [#allocation3], 0
    %9 = vsyncpa [#allocation6], 0
    %10 = vsyncpa [#allocation4], 0
    // Predicated region
    $region2: #{tpu_custom_call.1} parent=1 // pred_check
      _
    $region3: #{tpu_custom_call.1} parent=1 // pred_check_branch
      %12 = sbr.rel (0) target = $region5
    $region4: #{tpu_custom_call.1} parent=1 // pred_region
      %s14 = ssub.s32 64, 64
      %15 = vsyncadd [#allocation3], %s14
      %s17 = sshll.u32 [#allocation2], 4
      %s18 = int_to_ptr.vmem [resolvable:$true] %s17
      %20 = dma.hbm_to_vmem [thread:$0]  %s0, 64, %s18, [#allocation3]
    $region5: #{tpu_custom_call.1} parent=1 // pred_fallthru
      _
    // Predicated region
    $region6: #{tpu_custom_call.1} parent=1 // pred_check
      _
    $region7: #{tpu_custom_call.1} parent=1 // pred_check_branch
      %22 = sbr.rel (0) target = $region9
    $region8: #{tpu_custom_call.1} parent=1 // pred_region
      %s24 = ssub.s32 256, 256
      %25 = vsyncadd [#allocation6], %s24
      %s26 = sshll.u32 [#allocation5], 4
      %s27 = int_to_ptr.vmem [resolvable:$true] %s26
      %32 = dma.hbm_to_vmem [thread:$0]  %s1, 256, %s27, [#allocation6], 128, 128, 8
    $region9: #{tpu_custom_call.1} parent=1 // pred_fallthru
      _
    // Predicated region
    $region10: #{tpu_custom_call.1} parent=1 // pred_check
      _
    $region11: #{tpu_custom_call.1} parent=1 // pred_check_branch
      %34 = sbr.rel (0) target = $region13
    $region12: #{tpu_custom_call.1} parent=1 // pred_region
      %s36 = ssub.s32 256, 256
      %37 = vsyncadd [#allocation6], %s36
      %s38 = sshll.u32 [#allocation7], 4
      %s39 = int_to_ptr.vmem [resolvable:$true] %s38
      %44 = dma.hbm_to_vmem [thread:$0]  %s2, 256, %s39, [#allocation6], 128, 128, 8
    $region13: #{tpu_custom_call.1} parent=1 // pred_fallthru
      _
    // Predicated region
    $region14: #{tpu_custom_call.1} parent=1 // pred_check
      _
    $region15: #{tpu_custom_call.1} parent=1 // pred_check_branch
      %46 = sbr.rel (0) target = $region17
    $region16: #{tpu_custom_call.1} parent=1 // pred_region
      %47 = dma.done [#allocation3], 64
    $region17: #{tpu_custom_call.1} parent=1 // pred_fallthru
      _
    // Predicated region
    $region18: #{tpu_custom_call.1} parent=1 // pred_check
      _
    $region19: #{tpu_custom_call.1} parent=1 // pred_check_branch
      %49 = sbr.rel (0) target = $region21
    $region20: #{tpu_custom_call.1} parent=1 // pred_region
      %50 = dma.done [#allocation6], 256
    $region21: #{tpu_custom_call.1} parent=1 // pred_fallthru
      _
    // Predicated region
    $region22: #{tpu_custom_call.1} parent=1 // pred_check
      _
    $region23: #{tpu_custom_call.1} parent=1 // pred_check_branch
      %52 = sbr.rel (0) target = $region25
    $region24: #{tpu_custom_call.1} parent=1 // pred_region
      %53 = dma.done [#allocation6], 256
    $region25: #{tpu_custom_call.1} parent=1 // pred_fallthru
      _
    %v54 = vld [vmem:[#allocation5] sm:$0xff]
    %v55 = vld [vmem:[#allocation5 + $0x8] sm:$0xff]
    %v56 = vld [vmem:[#allocation2] sm:$0xf]
    %v57 = vld [vmem:[#allocation7] sm:$0xff]
    %v58 = vld [vmem:[#allocation7 + $0x8] sm:$0xff]
    %60 = vset.pattern.permute.xlu0 0
    %61 = vperm.xlu0 %60, %v56
    %v62 = vpop.permute.xlu0 %61
    %v66 = vlaneseq
    %v67 = vshrl.u32 %v66, 7
    %v68 = vsub.s32 0, %v67
    %v69 = vrot.slane %v54, %v68
    %v70 = vlaneseq
    %v71 = vshrl.u32 %v70, 7
    %v72 = vsub.s32 4, %v71
    %v73 = vrot.slane %v54, %v72
    %v74 = vlaneseq
    %v75 = vshrl.u32 %v74, 7
    %v76 = vsub.s32 0, %v75
    %v77 = vrot.slane %v55, %v76
    %v78 = vlaneseq
    %v79 = vshrl.u32 %v78, 7
    %v80 = vsub.s32 4, %v79
    %v81 = vrot.slane %v55, %v80
    %v86 = vlaneseq
    %v87 = vshrl.u32 %v86, 7
    %v88 = vsub.s32 0, %v87
    %v89 = vrot.slane %v69, %v88
    %v90 = vlaneseq
    %v91 = vshrl.u32 %v90, 7
    %v92 = vsub.s32 0, %v91
    %v93 = vrot.slane %v73, %v92
    %v94 = vlaneseq
    %v95 = vshrl.u32 %v94, 7
    %v96 = vsub.s32 0, %v95
    %v97 = vrot.slane %v77, %v96
    %v98 = vlaneseq
    %v99 = vshrl.u32 %v98, 7
    %v100 = vsub.s32 0, %v99
    %v101 = vrot.slane %v81, %v100
    %v102 = vmul.f32 %v62, %v89
    %v103 = vmul.f32 %v62, %v93
    %v104 = vmul.f32 %v62, %v97
    %v105 = vmul.f32 %v62, %v101
    %v110 = vcombine.low %v102, %v103
    %v111 = vcombine.low %v104, %v105
    %v114 = vadd.f32 %v57, %v110
    %v115 = vadd.f32 %v58, %v111
    %116 = vset.pattern.permute.xlu0 1
    %117 = vperm.xlu0 %116, %v56
    %v118 = vpop.permute.xlu0 %117
    %v120 = vlaneseq
    %v121 = vshrl.u32 %v120, 7
    %v122 = vsub.s32 1, %v121
    %v123 = vrot.slane %v54, %v122
    %v124 = vlaneseq
    %v125 = vshrl.u32 %v124, 7
    %v126 = vsub.s32 5, %v125
    %v127 = vrot.slane %v54, %v126
    %v128 = vlaneseq
    %v129 = vshrl.u32 %v128, 7
    %v130 = vsub.s32 1, %v129
    %v131 = vrot.slane %v55, %v130
    %v132 = vlaneseq
    %v133 = vshrl.u32 %v132, 7
    %v134 = vsub.s32 5, %v133
    %v135 = vrot.slane %v55, %v134
    %v140 = vlaneseq
    %v141 = vshrl.u32 %v140, 7
    %v142 = vsub.s32 1, %v141
    %v143 = vrot.slane %v123, %v142
    %v144 = vlaneseq
    %v145 = vshrl.u32 %v144, 7
    %v146 = vsub.s32 1, %v145
    %v147 = vrot.slane %v127, %v146
    %v148 = vlaneseq
    %v149 = vshrl.u32 %v148, 7
    %v150 = vsub.s32 1, %v149
    %v151 = vrot.slane %v131, %v150
    %v152 = vlaneseq
    %v153 = vshrl.u32 %v152, 7
    %v154 = vsub.s32 1, %v153
    %v155 = vrot.slane %v135, %v154
    %v156 = vmul.f32 %v118, %v143
    %v157 = vmul.f32 %v118, %v147
    %v158 = vmul.f32 %v118, %v151
    %v159 = vmul.f32 %v118, %v155
    %v164 = vcombine.low %v156, %v157
    %v165 = vcombine.low %v158, %v159
    %v168 = vadd.f32 %v114, %v164
    %v169 = vadd.f32 %v115, %v165
    %170 = vset.pattern.permute.xlu0 2
    %171 = vperm.xlu0 %170, %v56
    %v172 = vpop.permute.xlu0 %171
    %v174 = vlaneseq
    %v175 = vshrl.u32 %v174, 7
    %v176 = vsub.s32 2, %v175
    %v177 = vrot.slane %v54, %v176
    %v178 = vlaneseq
    %v179 = vshrl.u32 %v178, 7
    %v180 = vsub.s32 6, %v179
    %v181 = vrot.slane %v54, %v180
    %v182 = vlaneseq
    %v183 = vshrl.u32 %v182, 7
    %v184 = vsub.s32 2, %v183
    %v185 = vrot.slane %v55, %v184
    %v186 = vlaneseq
    %v187 = vshrl.u32 %v186, 7
    %v188 = vsub.s32 6, %v187
    %v189 = vrot.slane %v55, %v188
    %v194 = vlaneseq
    %v195 = vshrl.u32 %v194, 7
    %v196 = vsub.s32 2, %v195
    %v197 = vrot.slane %v177, %v196
    %v198 = vlaneseq
    %v199 = vshrl.u32 %v198, 7
    %v200 = vsub.s32 2, %v199
    %v201 = vrot.slane %v181, %v200
    %v202 = vlaneseq
    %v203 = vshrl.u32 %v202, 7
    %v204 = vsub.s32 2, %v203
    %v205 = vrot.slane %v185, %v204
    %v206 = vlaneseq
    %v207 = vshrl.u32 %v206, 7
    %v208 = vsub.s32 2, %v207
    %v209 = vrot.slane %v189, %v208
    %v210 = vmul.f32 %v172, %v197
    %v211 = vmul.f32 %v172, %v201
    %v212 = vmul.f32 %v172, %v205
    %v213 = vmul.f32 %v172, %v209
    %v218 = vcombine.low %v210, %v211
    %v219 = vcombine.low %v212, %v213
    %v222 = vadd.f32 %v168, %v218
    %v223 = vadd.f32 %v169, %v219
    %224 = vset.pattern.permute.xlu0 3
    %225 = vperm.xlu0 %224, %v56
    %v226 = vpop.permute.xlu0 %225
    %v228 = vlaneseq
    %v229 = vshrl.u32 %v228, 7
    %v230 = vsub.s32 3, %v229
    %v231 = vrot.slane %v54, %v230
    %v232 = vlaneseq
    %v233 = vshrl.u32 %v232, 7
    %v234 = vsub.s32 7, %v233
    %v235 = vrot.slane %v54, %v234
    %v236 = vlaneseq
    %v237 = vshrl.u32 %v236, 7
    %v238 = vsub.s32 3, %v237
    %v239 = vrot.slane %v55, %v238
    %v240 = vlaneseq
    %v241 = vshrl.u32 %v240, 7
    %v242 = vsub.s32 7, %v241
    %v243 = vrot.slane %v55, %v242
    %v248 = vlaneseq
    %v249 = vshrl.u32 %v248, 7
    %v250 = vsub.s32 3, %v249
    %v251 = vrot.slane %v231, %v250
    %v252 = vlaneseq
    %v253 = vshrl.u32 %v252, 7
    %v254 = vsub.s32 3, %v253
    %v255 = vrot.slane %v235, %v254
    %v256 = vlaneseq
    %v257 = vshrl.u32 %v256, 7
    %v258 = vsub.s32 3, %v257
    %v259 = vrot.slane %v239, %v258
    %v260 = vlaneseq
    %v261 = vshrl.u32 %v260, 7
    %v262 = vsub.s32 3, %v261
    %v263 = vrot.slane %v243, %v262
    %v264 = vmul.f32 %v226, %v251
    %v265 = vmul.f32 %v226, %v255
    %v266 = vmul.f32 %v226, %v259
    %v267 = vmul.f32 %v226, %v263
    %v272 = vcombine.low %v264, %v265
    %v273 = vcombine.low %v266, %v267
    %v276 = vadd.f32 %v222, %v272
    %v277 = vadd.f32 %v223, %v273
    %278 = vst [vmem:[#allocation8] sm:$0xff] %v276
    %279 = vst [vmem:[#allocation8 + $0x8] sm:$0xff] %v277
    // Predicated region
    $region26: #{tpu_custom_call.1} parent=1 // pred_check
      _
    $region27: #{tpu_custom_call.1} parent=1 // pred_check_branch
      %281 = sbr.rel (0) target = $region29
    $region28: #{tpu_custom_call.1} parent=1 // pred_region
      %s283 = ssub.s32 256, 256
      %284 = vsyncadd [#allocation4], %s283
      %s285 = sshll.u32 [#allocation8], 4
      %s286 = int_to_ptr.vmem [resolvable:$true] %s285
      %291 = dma.vmem_to_hbm [thread:$0]  %s286, 256, %s3, [#allocation4], 128, 128, 8
    $region29: #{tpu_custom_call.1} parent=1 // pred_fallthru
      _
    // Predicated region
    $region30: #{tpu_custom_call.1} parent=1 // pred_check
      _
    $region31: #{tpu_custom_call.1} parent=1 // pred_check_branch
      %293 = sbr.rel (0) target = $region33
    $region32: #{tpu_custom_call.1} parent=1 // pred_region
      %294 = dma.done [#allocation4], 256
    $region33: #{tpu_custom_call.1} parent=1 // pred_fallthru
      _
    %295 = vsyncpa [#allocation3], 1
    %296 = vsyncpa [#allocation6], 1
    %297 = vsyncpa [#allocation4], 1

</llo_original>
